<compile_context>
chip_gen: v7x
topology: tpu7x:2x2x1
jax: 0.10.0
libtpu: 0.0.40
codegen_flags: <defaults>
</compile_context>

<pallas_src>
import jax
import jax.numpy as jnp
from jax import lax
from jax.experimental import pallas as pl
from jax.experimental.pallas import tpu as pltpu

# Problem sizes (small, per module spec)
B, C_IN, H, W = 2, 4, 16, 16
C_OUT = 8
NUM_CLASSES = 10
KH = KW = 3
LANES_IN = W * C_IN          # 64
LANES_OUT = W * C_OUT        # 128
OUT_PAD = 128                # lane-dense logits slab


# --------------------------------------------------------------------------
# Kernel: one grid step = one batch chunk of TILE_B images.
# --------------------------------------------------------------------------
def teacher_kernel(x_ref, mean_ref, inv_std_ref, mask_top_ref, mask_bot_ref,
                   w_up_ref, w_mid_ref, w_dn_ref, bconv_ref,
                   pool_ref, wpf_ref, bfc_ref, out_ref):
    """
    x_ref       : (TILE_B*H, W*C_IN)  f32   rows=(b,i), lanes=(j,ic)
    mean_ref    : (1, W*C_IN)         f32   per-channel mean, tiled over W
    inv_std_ref : (1, W*C_IN)         f32   per-channel 1/std, tiled over W
    mask_*_ref  : (TILE_B*H, W*C_IN)  f32   0/1 top/bottom border masks
    w_up/mid/dn : (W*C_IN, W*C_OUT)   bf16  banded conv weight, one H-tap each
    bconv_ref   : (1, W*C_OUT)        f32   conv bias, tiled over W
    pool_ref    : (POOL_ROWS, TILE_B*H) bf16  per-image row pooling (1/H entries)
    wpf_ref     : (W*C_OUT, OUT_PAD)  bf16  fused (avg over j,oc -> FC) weight
    bfc_ref     : (1, OUT_PAD)        f32   FC bias (lane-padded)
    out_ref     : (POOL_ROWS, OUT_PAD) f32  logits (row/lane padded)
    """
    m_rows = x_ref.shape[0]

    # transform: per-channel normalization (f32, VPU) -- stays in vregs
    xn = (x_ref[...] - mean_ref[...]) * inv_std_ref[...]             # (M, 64)

    # H-direction conv taps: sublane rolls (XLU) + constant 0/1 border masks
    up = pltpu.roll(xn, shift=1, axis=0) * mask_top_ref[...]          # row i-1
    dn = pltpu.roll(xn, shift=m_rows - 1, axis=0) * mask_bot_ref[...] # row i+1

    # 3x3 SAME conv as three accumulating MXU matmuls (bf16 in, f32 acc).
    bf = jnp.bfloat16
    conv = jnp.dot(xn.astype(bf), w_mid_ref[...],
                   preferred_element_type=jnp.float32)                # (M, 128)
    conv = conv + jnp.dot(up.astype(bf), w_up_ref[...],
                          preferred_element_type=jnp.float32)
    conv = conv + jnp.dot(dn.astype(bf), w_dn_ref[...],
                          preferred_element_type=jnp.float32)
    act = jnp.maximum(conv + bconv_ref[...], 0.0)                     # ReLU, f32

    # Pool image rows (1/H folded into pool matrix) on the MXU ...
    pooled = jnp.dot(pool_ref[...], act.astype(bf),
                     preferred_element_type=jnp.float32)              # (PR, 128)
    # ... then fused (avg over j,oc -> FC) as one (PR,128)@(128,128) dot.
    logits = jnp.dot(pooled.astype(bf), wpf_ref[...],
                     preferred_element_type=jnp.float32) + bfc_ref[...]
    out_ref[...] = logits                                             # full tile


# --------------------------------------------------------------------------
# One-time operand preparation (hoisted out of the per-call path).
# --------------------------------------------------------------------------
def prepare_teacher(params, tile_b):
    mean, std, wconv, bconv, wfc, bfc = params
    m_rows = tile_b * H
    pool_rows = max(8, ((tile_b + 7) // 8) * 8)

    mean_t = jnp.tile(mean.reshape(1, C_IN), (1, W)).astype(jnp.float32)
    inv_std_t = jnp.tile((1.0 / std).reshape(1, C_IN), (1, W)).astype(jnp.float32)

    # Constant top/bottom border masks (zero the wrapped roll rows).
    row = jnp.arange(m_rows) % H
    mask_top = jnp.tile((row >= 1).astype(jnp.float32)[:, None], (1, LANES_IN))
    mask_bot = jnp.tile((row <= H - 2).astype(jnp.float32)[:, None], (1, LANES_IN))

    # Banded conv weight: wbig[(t*W + jp)*C_IN + ic, j*C_OUT + oc]
    #   = wconv[t, jp - j + 1, ic, oc] if |jp - j| <= 1 else 0
    w = wconv.reshape(KH, KW, C_IN, C_OUT).astype(jnp.float32)
    j_out = jnp.arange(W)
    jp = jnp.arange(W)
    dws = jnp.arange(KW)
    band = (jp[None, :, None] == (j_out[None, None, :] + dws[:, None, None] - 1))
    wbig = jnp.einsum("dpj,tdio->tpijo", band.astype(jnp.float32), w)
    wbig = wbig.reshape(KH * W * C_IN, W * C_OUT)                     # (192, 128)
    w_up = wbig[0:LANES_IN].astype(jnp.bfloat16)                      # H-tap i-1
    w_mid = wbig[LANES_IN:2 * LANES_IN].astype(jnp.bfloat16)          # H-tap i
    w_dn = wbig[2 * LANES_IN:].astype(jnp.bfloat16)                   # H-tap i+1

    bconv_t = jnp.tile(bconv.reshape(1, C_OUT), (1, W)).astype(jnp.float32)

    # Per-image row-pooling matrix; 1/H is exact in bf16 (power of 2).
    img = jnp.arange(m_rows) // H
    rows = jnp.arange(pool_rows)
    pool_mat = ((rows[:, None] == img[None, :]).astype(jnp.float32) / float(H))
    pool_mat = pool_mat.astype(jnp.bfloat16)                          # (PR, M)

    # Fused (avg over j, oc -> FC) weight: 1/W folded here (also exact).
    wfc_pad = jnp.zeros((C_OUT, OUT_PAD), jnp.float32)
    wfc_pad = wfc_pad.at[:, :NUM_CLASSES].set(wfc / float(W))
    wpf = jnp.tile(wfc_pad, (W, 1)).astype(jnp.bfloat16)              # (128, 128)

    bfc_pad = jnp.zeros((1, OUT_PAD), jnp.float32)
    bfc_pad = bfc_pad.at[:, :NUM_CLASSES].set(bfc)

    return (mean_t, inv_std_t, mask_top, mask_bot, w_up, w_mid, w_dn,
            bconv_t, pool_mat, wpf, bfc_pad)


# --------------------------------------------------------------------------
# Jitted forward: transform + model, inference only.
# --------------------------------------------------------------------------
def make_teacher_forward(tile_b):
    m_rows = tile_b * H
    pool_rows = max(8, ((tile_b + 7) // 8) * 8)

    @jax.jit
    def forward(x_nchw, prepped):
        (mean_t, inv_std_t, mask_top, mask_bot, w_up, w_mid, w_dn,
         bconv_t, pool_mat, wpf, bfc_pad) = prepped

        b = x_nchw.shape[0]
        b_pad = ((b + tile_b - 1) // tile_b) * tile_b
        num_chunks = b_pad // tile_b

        # NCHW -> lane-dense (B*H, W*C_IN) slab (fused into the jitted program).
        x = jnp.transpose(x_nchw, (0, 2, 3, 1)).astype(jnp.float32)
        if b_pad != b:
            x = jnp.pad(x, ((0, b_pad - b), (0, 0), (0, 0), (0, 0)))
        x2 = x.reshape(b_pad * H, LANES_IN)

        const = lambda i: (0, 0)  # weights/constants: DMA once, VMEM-resident
        grid_spec = pltpu.PrefetchScalarGridSpec(
            num_scalar_prefetch=0,
            grid=(num_chunks,),
            in_specs=[
                pl.BlockSpec((m_rows, LANES_IN), lambda i: (i, 0)),   # x
                pl.BlockSpec((1, LANES_IN), const),                   # mean
                pl.BlockSpec((1, LANES_IN), const),                   # inv_std
                pl.BlockSpec((m_rows, LANES_IN), const),              # mask_top
                pl.BlockSpec((m_rows, LANES_IN), const),              # mask_bot
                pl.BlockSpec((LANES_IN, LANES_OUT), const),           # w_up
                pl.BlockSpec((LANES_IN, LANES_OUT), const),           # w_mid
                pl.BlockSpec((LANES_IN, LANES_OUT), const),           # w_dn
                pl.BlockSpec((1, LANES_OUT), const),                  # bconv
                pl.BlockSpec((pool_rows, m_rows), const),             # pool
                pl.BlockSpec((LANES_OUT, OUT_PAD), const),            # wpf
                pl.BlockSpec((1, OUT_PAD), const),                    # bfc
            ],
            out_specs=pl.BlockSpec((pool_rows, OUT_PAD), lambda i: (i, 0)),
        )

        out = pl.pallas_call(
            teacher_kernel,
            out_shape=jax.ShapeDtypeStruct((num_chunks * pool_rows, OUT_PAD),
                                           jnp.float32),
            grid_spec=grid_spec,
            compiler_params=pltpu.CompilerParams(
                dimension_semantics=("parallel",)),
        )(x2, mean_t, inv_std_t, mask_top, mask_bot,
          w_up, w_mid, w_dn, bconv_t, pool_mat, wpf, bfc_pad)

        logits = out.reshape(num_chunks, pool_rows, OUT_PAD)[:, :tile_b, :NUM_CLASSES]
        logits = logits.reshape(b_pad, NUM_CLASSES)[:b]
        # torch.no_grad() equivalent: block gradient propagation through teacher.
        return lax.stop_gradient(logits)

    return forward


# --------------------------------------------------------------------------
# Pure-JAX reference (for verification) and synthetic parameters.
# --------------------------------------------------------------------------
def teacher_reference(x_nchw, params):
    mean, std, wconv, bconv, wfc, bfc = params
    x = jnp.transpose(x_nchw, (0, 2, 3, 1)).astype(jnp.float32)     # NHWC
    xn = (x - mean.reshape(1, 1, 1, C_IN)) / std.reshape(1, 1, 1, C_IN)
    w_hwio = wconv.reshape(KH, KW, C_IN, C_OUT)
    conv = lax.conv_general_dilated(
        xn, w_hwio, window_strides=(1, 1), padding="SAME",
        dimension_numbers=("NHWC", "HWIO", "NHWC"))
    conv = conv + bconv.reshape(1, 1, 1, C_OUT)
    act = jnp.maximum(conv, 0.0)
    pooled = jnp.mean(act, axis=(1, 2))                             # (B, C_OUT)
    return pooled @ wfc + bfc


def make_params():
    """Deterministic synthetic teacher parameters (no checkpoint loading)."""
    key = jax.random.PRNGKey(42)
    k1, k2, k3, k4 = jax.random.split(key, 4)
    wconv = jax.random.normal(k1, (KH * KW, C_IN, C_OUT), jnp.float32) * 0.1
    bconv = jax.random.normal(k2, (1, C_OUT), jnp.float32) * 0.1
    wfc = jax.random.normal(k3, (C_OUT, NUM_CLASSES), jnp.float32) * 0.1
    bfc = jax.random.normal(k4, (1, NUM_CLASSES), jnp.float32) * 0.1
    mean = jnp.full((1, C_IN), 0.5, jnp.float32)
    std = jnp.full((1, C_IN), 0.25, jnp.float32)
    return (mean, std, wconv, bconv, wfc, bfc)


if __name__ == "__main__":
    params = make_params()
    x = jax.random.normal(jax.random.PRNGKey(0), (B, C_IN, H, W), jnp.float32)

    # Small example: one chunk (grid=(1,)).  For larger batches use
    # TILE_B = 8 (M = 128 rows per step -> full MXU rows on v5e) or 16 on
    # v6e/v7x; weights stay VMEM-resident across all grid steps.
    TILE_B = B
    prepped = prepare_teacher(params, TILE_B)       # built once, reused per call
    teacher_forward = make_teacher_forward(TILE_B)

    out = jax.block_until_ready(teacher_forward(x, prepped))
    ref = jax.block_until_ready(teacher_reference(x, params))

    assert out.shape == (B, NUM_CLASSES)
    # bf16 MXU operands -> loosened tolerance per review.
    assert jnp.allclose(out, ref, atol=2e-2, rtol=2e-2), (out, ref)

    print("KERNEL_OK")
</pallas_src>

<mosaic_0001>
module attributes {stable_mosaic.version = 11 : i64} {
  func.func @teacher_kernel(%arg0: i32, %arg1: memref<32x64xf32, #tpu.memory_space<vmem>>, %arg2: memref<1x64xf32, #tpu.memory_space<vmem>>, %arg3: memref<1x64xf32, #tpu.memory_space<vmem>>, %arg4: memref<32x64xf32, #tpu.memory_space<vmem>>, %arg5: memref<32x64xf32, #tpu.memory_space<vmem>>, %arg6: memref<64x128xbf16, #tpu.memory_space<vmem>>, %arg7: memref<64x128xbf16, #tpu.memory_space<vmem>>, %arg8: memref<64x128xbf16, #tpu.memory_space<vmem>>, %arg9: memref<1x128xf32, #tpu.memory_space<vmem>>, %arg10: memref<8x32xbf16, #tpu.memory_space<vmem>>, %arg11: memref<128x128xbf16, #tpu.memory_space<vmem>>, %arg12: memref<1x128xf32, #tpu.memory_space<vmem>>, %arg13: memref<8x128xf32, #tpu.memory_space<vmem>>) attributes {dimension_semantics = [#tpu.dimension_semantics<parallel>], iteration_bounds = array<i64: 1>, scalar_prefetch = 0 : i64, scratch_operands = 0 : i64, tpu.core_type = #tpu.core_type<tc>, window_params = [{transform_indices = @transform_0, window_bounds = array<i64: 32, 64>}, {pipeline_mode = #tpu.pipeline_mode<synchronous>, transform_indices = @transform_1, window_bounds = array<i64: 1, 64>}, {pipeline_mode = #tpu.pipeline_mode<synchronous>, transform_indices = @transform_2, window_bounds = array<i64: 1, 64>}, {pipeline_mode = #tpu.pipeline_mode<synchronous>, transform_indices = @transform_3, window_bounds = array<i64: 32, 64>}, {pipeline_mode = #tpu.pipeline_mode<synchronous>, transform_indices = @transform_4, window_bounds = array<i64: 32, 64>}, {pipeline_mode = #tpu.pipeline_mode<synchronous>, transform_indices = @transform_5, window_bounds = array<i64: 64, 128>}, {pipeline_mode = #tpu.pipeline_mode<synchronous>, transform_indices = @transform_6, window_bounds = array<i64: 64, 128>}, {pipeline_mode = #tpu.pipeline_mode<synchronous>, transform_indices = @transform_7, window_bounds = array<i64: 64, 128>}, {pipeline_mode = #tpu.pipeline_mode<synchronous>, transform_indices = @transform_8, window_bounds = array<i64: 1, 128>}, {pipeline_mode = #tpu.pipeline_mode<synchronous>, transform_indices = @transform_9, window_bounds = array<i64: 8, 32>}, {pipeline_mode = #tpu.pipeline_mode<synchronous>, transform_indices = @transform_10, window_bounds = array<i64: 128, 128>}, {pipeline_mode = #tpu.pipeline_mode<synchronous>, transform_indices = @transform_11, window_bounds = array<i64: 1, 128>}, {transform_indices = @transform_12, window_bounds = array<i64: 8, 128>}]} {
    %c0 = arith.constant 0 : index
    %c0_0 = arith.constant 0 : index
    %0 = vector.load %arg1[%c0, %c0_0] : memref<32x64xf32, #tpu.memory_space<vmem>>, vector<32x64xf32>
    %c0_1 = arith.constant 0 : index
    %c0_2 = arith.constant 0 : index
    %1 = vector.load %arg2[%c0_1, %c0_2] : memref<1x64xf32, #tpu.memory_space<vmem>>, vector<1x64xf32>
    %2 = vector.broadcast %1 : vector<1x64xf32> to vector<32x64xf32>
    %3 = arith.subf %0, %2 : vector<32x64xf32>
    %c0_3 = arith.constant 0 : index
    %c0_4 = arith.constant 0 : index
    %4 = vector.load %arg3[%c0_3, %c0_4] : memref<1x64xf32, #tpu.memory_space<vmem>>, vector<1x64xf32>
    %5 = vector.broadcast %4 : vector<1x64xf32> to vector<32x64xf32>
    %6 = arith.mulf %3, %5 : vector<32x64xf32>
    %c1_i32 = arith.constant 1 : i32
    %7 = tpu.dynamic_rotate %6 by %c1_i32 dim 0 : vector<32x64xf32>, i32 -> vector<32x64xf32>
    %c0_5 = arith.constant 0 : index
    %c0_6 = arith.constant 0 : index
    %8 = vector.load %arg4[%c0_5, %c0_6] : memref<32x64xf32, #tpu.memory_space<vmem>>, vector<32x64xf32>
    %9 = arith.mulf %7, %8 : vector<32x64xf32>
    %c31_i32 = arith.constant 31 : i32
    %10 = tpu.dynamic_rotate %6 by %c31_i32 dim 0 : vector<32x64xf32>, i32 -> vector<32x64xf32>
    %c0_7 = arith.constant 0 : index
    %c0_8 = arith.constant 0 : index
    %11 = vector.load %arg5[%c0_7, %c0_8] : memref<32x64xf32, #tpu.memory_space<vmem>>, vector<32x64xf32>
    %12 = arith.mulf %10, %11 : vector<32x64xf32>
    %13 = arith.truncf %6 : vector<32x64xf32> to vector<32x64xbf16>
    %c0_9 = arith.constant 0 : index
    %c0_10 = arith.constant 0 : index
    %14 = vector.load %arg7[%c0_9, %c0_10] : memref<64x128xbf16, #tpu.memory_space<vmem>>, vector<64x128xbf16>
    %cst = arith.constant dense<0.000000e+00> : vector<32x128xf32>
    %15 = tpu.matmul %13, %14, %cst {dimension_numbers = #tpu.dot_dimension_numbers<[1], [0], [0], [1], [0, 0, 1, 1], [], []>} : vector<32x64xbf16>, vector<64x128xbf16>, vector<32x128xf32> -> vector<32x128xf32>
    %16 = arith.truncf %9 : vector<32x64xf32> to vector<32x64xbf16>
    %c0_11 = arith.constant 0 : index
    %c0_12 = arith.constant 0 : index
    %17 = vector.load %arg6[%c0_11, %c0_12] : memref<64x128xbf16, #tpu.memory_space<vmem>>, vector<64x128xbf16>
    %cst_13 = arith.constant dense<0.000000e+00> : vector<32x128xf32>
    %18 = tpu.matmul %16, %17, %cst_13 {dimension_numbers = #tpu.dot_dimension_numbers<[1], [0], [0], [1], [0, 0, 1, 1], [], []>} : vector<32x64xbf16>, vector<64x128xbf16>, vector<32x128xf32> -> vector<32x128xf32>
    %19 = arith.addf %15, %18 : vector<32x128xf32>
    %20 = arith.truncf %12 : vector<32x64xf32> to vector<32x64xbf16>
    %c0_14 = arith.constant 0 : index
    %c0_15 = arith.constant 0 : index
    %21 = vector.load %arg8[%c0_14, %c0_15] : memref<64x128xbf16, #tpu.memory_space<vmem>>, vector<64x128xbf16>
    %cst_16 = arith.constant dense<0.000000e+00> : vector<32x128xf32>
    %22 = tpu.matmul %20, %21, %cst_16 {dimension_numbers = #tpu.dot_dimension_numbers<[1], [0], [0], [1], [0, 0, 1, 1], [], []>} : vector<32x64xbf16>, vector<64x128xbf16>, vector<32x128xf32> -> vector<32x128xf32>
    %23 = arith.addf %19, %22 : vector<32x128xf32>
    %c0_17 = arith.constant 0 : index
    %c0_18 = arith.constant 0 : index
    %24 = vector.load %arg9[%c0_17, %c0_18] : memref<1x128xf32, #tpu.memory_space<vmem>>, vector<1x128xf32>
    %25 = vector.broadcast %24 : vector<1x128xf32> to vector<32x128xf32>
    %26 = arith.addf %23, %25 : vector<32x128xf32>
    %cst_19 = arith.constant 0.000000e+00 : f32
    %27 = vector.broadcast %cst_19 : f32 to vector<32x128xf32>
    %28 = arith.maximumf %26, %27 : vector<32x128xf32>
    %c0_20 = arith.constant 0 : index
    %c0_21 = arith.constant 0 : index
    %29 = vector.load %arg10[%c0_20, %c0_21] : memref<8x32xbf16, #tpu.memory_space<vmem>>, vector<8x32xbf16>
    %30 = arith.truncf %28 : vector<32x128xf32> to vector<32x128xbf16>
    %cst_22 = arith.constant dense<0.000000e+00> : vector<8x128xf32>
    %31 = tpu.matmul %29, %30, %cst_22 {dimension_numbers = #tpu.dot_dimension_numbers<[1], [0], [0], [1], [0, 0, 1, 1], [], []>} : vector<8x32xbf16>, vector<32x128xbf16>, vector<8x128xf32> -> vector<8x128xf32>
    %32 = arith.truncf %31 : vector<8x128xf32> to vector<8x128xbf16>
    %c0_23 = arith.constant 0 : index
    %c0_24 = arith.constant 0 : index
    %33 = vector.load %arg11[%c0_23, %c0_24] : memref<128x128xbf16, #tpu.memory_space<vmem>>, vector<128x128xbf16>
    %cst_25 = arith.constant dense<0.000000e+00> : vector<8x128xf32>
    %34 = tpu.matmul %32, %33, %cst_25 {dimension_numbers = #tpu.dot_dimension_numbers<[1], [0], [0], [1], [0, 0, 1, 1], [], []>} : vector<8x128xbf16>, vector<128x128xbf16>, vector<8x128xf32> -> vector<8x128xf32>
    %c0_26 = arith.constant 0 : index
    %c0_27 = arith.constant 0 : index
    %35 = vector.load %arg12[%c0_26, %c0_27] : memref<1x128xf32, #tpu.memory_space<vmem>>, vector<1x128xf32>
    %36 = vector.broadcast %35 : vector<1x128xf32> to vector<8x128xf32>
    %37 = arith.addf %34, %36 : vector<8x128xf32>
    %c0_28 = arith.constant 0 : index
    %c0_29 = arith.constant 0 : index
    %38 = vector.load %arg13[%c0_28, %c0_29] : memref<8x128xf32, #tpu.memory_space<vmem>>, vector<8x128xf32>
    tpu.vector_store %arg13[%c0_28, %c0_29], %37 {strides = array<i32>} : memref<8x128xf32, #tpu.memory_space<vmem>>, vector<8x128xf32>,
    return
  }
  func.func @transform_0(%arg0: i32) -> (i32, i32) {
    %c0_i32 = arith.constant 0 : i32
    %c0_i32_0 = arith.constant 0 : i32
    return %arg0, %c0_i32 : i32, i32
  }
  func.func @transform_1(%arg0: i32) -> (i32, i32) {
    %c0_i32 = arith.constant 0 : i32
    %c0_i32_0 = arith.constant 0 : i32
    %c0_i32_1 = arith.constant 0 : i32
    return %c0_i32, %c0_i32_0 : i32, i32
  }
  func.func @transform_2(%arg0: i32) -> (i32, i32) {
    %c0_i32 = arith.constant 0 : i32
    %c0_i32_0 = arith.constant 0 : i32
    %c0_i32_1 = arith.constant 0 : i32
    return %c0_i32, %c0_i32_0 : i32, i32
  }
  func.func @transform_3(%arg0: i32) -> (i32, i32) {
    %c0_i32 = arith.constant 0 : i32
    %c0_i32_0 = arith.constant 0 : i32
    %c0_i32_1 = arith.constant 0 : i32
    return %c0_i32, %c0_i32_0 : i32, i32
  }
  func.func @transform_4(%arg0: i32) -> (i32, i32) {
    %c0_i32 = arith.constant 0 : i32
    %c0_i32_0 = arith.constant 0 : i32
    %c0_i32_1 = arith.constant 0 : i32
    return %c0_i32, %c0_i32_0 : i32, i32
  }
  func.func @transform_5(%arg0: i32) -> (i32, i32) {
    %c0_i32 = arith.constant 0 : i32
    %c0_i32_0 = arith.constant 0 : i32
    %c0_i32_1 = arith.constant 0 : i32
    return %c0_i32, %c0_i32_0 : i32, i32
  }
  func.func @transform_6(%arg0: i32) -> (i32, i32) {
    %c0_i32 = arith.constant 0 : i32
    %c0_i32_0 = arith.constant 0 : i32
    %c0_i32_1 = arith.constant 0 : i32
    return %c0_i32, %c0_i32_0 : i32, i32
  }
  func.func @transform_7(%arg0: i32) -> (i32, i32) {
    %c0_i32 = arith.constant 0 : i32
    %c0_i32_0 = arith.constant 0 : i32
    %c0_i32_1 = arith.constant 0 : i32
    return %c0_i32, %c0_i32_0 : i32, i32
  }
  func.func @transform_8(%arg0: i32) -> (i32, i32) {
    %c0_i32 = arith.constant 0 : i32
    %c0_i32_0 = arith.constant 0 : i32
    %c0_i32_1 = arith.constant 0 : i32
    return %c0_i32, %c0_i32_0 : i32, i32
  }
  func.func @transform_9(%arg0: i32) -> (i32, i32) {
    %c0_i32 = arith.constant 0 : i32
    %c0_i32_0 = arith.constant 0 : i32
    %c0_i32_1 = arith.constant 0 : i32
    return %c0_i32, %c0_i32_0 : i32, i32
  }
  func.func @transform_10(%arg0: i32) -> (i32, i32) {
    %c0_i32 = arith.constant 0 : i32
    %c0_i32_0 = arith.constant 0 : i32
    %c0_i32_1 = arith.constant 0 : i32
    return %c0_i32, %c0_i32_0 : i32, i32
  }
  func.func @transform_11(%arg0: i32) -> (i32, i32) {
    %c0_i32 = arith.constant 0 : i32
    %c0_i32_0 = arith.constant 0 : i32
    %c0_i32_1 = arith.constant 0 : i32
    return %c0_i32, %c0_i32_0 : i32, i32
  }
  func.func @transform_12(%arg0: i32) -> (i32, i32) {
    %c0_i32 = arith.constant 0 : i32
    %c0_i32_0 = arith.constant 0 : i32
    return %arg0, %c0_i32 : i32, i32
  }
}

</mosaic_0001>

<llo_original>
// kernel: forward.1
$region0: #{forward.1}
  #allocation0 [shape = 'u32[]', space=smem, size = 0x4, offset = 0x4, fixed_abs, tag = 'smem constant byte address 0x4 - core index']
  #allocation1 [shape = 'u32[144,128]{1,0:T(1,128)}', space=vmem, size = 0x12000, scoped, tag = 'internal scratch']
  %s0 = inlined_call_operand.vmem [shape: f32[32,64], index: 0, kind: input, shape index: {}]
  %s1 = inlined_call_operand.vmem [shape: f32[1,64], index: 1, kind: input, shape index: {}]
  %s2 = inlined_call_operand.vmem [shape: f32[1,64], index: 2, kind: input, shape index: {}]
  %s3 = inlined_call_operand.vmem [shape: f32[32,64], index: 3, kind: input, shape index: {}]
  %s4 = inlined_call_operand.vmem [shape: f32[32,64], index: 4, kind: input, shape index: {}]
  %s5 = inlined_call_operand.vmem [shape: bf16[64,128], index: 5, kind: input, shape index: {}]
  %s6 = inlined_call_operand.vmem [shape: bf16[64,128], index: 6, kind: input, shape index: {}]
  %s7 = inlined_call_operand.vmem [shape: bf16[64,128], index: 7, kind: input, shape index: {}]
  %s8 = inlined_call_operand.vmem [shape: f32[1,128], index: 8, kind: input, shape index: {}]
  %s9 = inlined_call_operand.vmem [shape: bf16[8,32], index: 9, kind: input, shape index: {}]
  %s10 = inlined_call_operand.vmem [shape: bf16[128,128], index: 10, kind: input, shape index: {}]
  %s11 = inlined_call_operand.vmem [shape: f32[1,128], index: 11, kind: input, shape index: {}]
  %s12 = inlined_call_operand.vmem [shape: f32[8,128], index: 12, kind: output, shape index: {}]
  %s13 = sld [smem:[#allocation0]]
  $region58: #{forward.1} parent=0
    _
  %s15 = ssub.s32 1, %s13
  %s16 = scalar_select 0, %s15, %s13
  // Predicated region
  $region2: #{forward.1} parent=0 // pred_check
    _
  $region3: #{forward.1} parent=0 // pred_check_branch
    %18 = sbr.rel (0) target = $region5
  $region4: #{forward.1} parent=0 // pred_region
    _
  $region5: #{forward.1} parent=0 // pred_fallthru
    _
  // Predicated region
  $region6: #{forward.1} parent=0 // pred_check
    _
  $region7: #{forward.1} parent=0 // pred_check_branch
    %20 = sbr.rel (0) target = $region9
  $region8: #{forward.1} parent=0 // pred_region
    _
  $region9: #{forward.1} parent=0 // pred_fallthru
    _
  // Predicated region
  $region10: #{forward.1} parent=0 // pred_check
    _
  $region11: #{forward.1} parent=0 // pred_check_branch
    %22 = sbr.rel (0) target = $region13
  $region12: #{forward.1} parent=0 // pred_region
    _
  $region13: #{forward.1} parent=0 // pred_fallthru
    _
  // Predicated region
  $region14: #{forward.1} parent=0 // pred_check
    _
  $region15: #{forward.1} parent=0 // pred_check_branch
    %24 = sbr.rel (0) target = $region17
  $region16: #{forward.1} parent=0 // pred_region
    _
  $region17: #{forward.1} parent=0 // pred_fallthru
    _
  // Predicated region
  $region18: #{forward.1} parent=0 // pred_check
    _
  $region19: #{forward.1} parent=0 // pred_check_branch
    %26 = sbr.rel (0) target = $region21
  $region20: #{forward.1} parent=0 // pred_region
    _
  $region21: #{forward.1} parent=0 // pred_fallthru
    _
  // Predicated region
  $region22: #{forward.1} parent=0 // pred_check
    _
  $region23: #{forward.1} parent=0 // pred_check_branch
    %28 = sbr.rel (0) target = $region25
  $region24: #{forward.1} parent=0 // pred_region
    _
  $region25: #{forward.1} parent=0 // pred_fallthru
    _
  // Predicated region
  $region26: #{forward.1} parent=0 // pred_check
    _
  $region27: #{forward.1} parent=0 // pred_check_branch
    %30 = sbr.rel (0) target = $region29
  $region28: #{forward.1} parent=0 // pred_region
    _
  $region29: #{forward.1} parent=0 // pred_fallthru
    _
  // Predicated region
  $region30: #{forward.1} parent=0 // pred_check
    _
  $region31: #{forward.1} parent=0 // pred_check_branch
    %32 = sbr.rel (0) target = $region33
  $region32: #{forward.1} parent=0 // pred_region
    _
  $region33: #{forward.1} parent=0 // pred_fallthru
    _
  // Predicated region
  $region34: #{forward.1} parent=0 // pred_check
    _
  $region35: #{forward.1} parent=0 // pred_check_branch
    %34 = sbr.rel (0) target = $region37
  $region36: #{forward.1} parent=0 // pred_region
    _
  $region37: #{forward.1} parent=0 // pred_fallthru
    _
  // Predicated region
  $region38: #{forward.1} parent=0 // pred_check
    _
  $region39: #{forward.1} parent=0 // pred_check_branch
    %36 = sbr.rel (0) target = $region41
  $region40: #{forward.1} parent=0 // pred_region
    _
  $region41: #{forward.1} parent=0 // pred_fallthru
    _
  // Predicated region
  $region42: #{forward.1} parent=0 // pred_check
    _
  $region43: #{forward.1} parent=0 // pred_check_branch
    %38 = sbr.rel (0) target = $region45
  $region44: #{forward.1} parent=0 // pred_region
    _
  $region45: #{forward.1} parent=0 // pred_fallthru
    _
  // Predicated region
  $region46: #{forward.1} parent=0 // pred_check
    _
  $region47: #{forward.1} parent=0 // pred_check_branch
    %40 = sbr.rel (0) target = $region49
  $region48: #{forward.1} parent=0 // pred_region
    _
  $region49: #{forward.1} parent=0 // pred_fallthru
    _
  %v42 = vld [vmem:[%s0] sm:$0xff]
  %v43 = vld [vmem:[%s0 + $0x8] sm:$0xff]
  %v44 = vld [vmem:[%s0 + $0x10] sm:$0xff]
  %v45 = vld [vmem:[%s0 + $0x18] sm:$0xff]
  %v46 = vld [vmem:[%s1] sm:$0x1]
  %v48 = vlaneseq
  %v49 = vshrl.u32 %v48, 7
  %v50 = vsub.s32 0, %v49
  %v51 = vrot.slane %v46, %v50
  %v53 = vsub.f32 %v42, %v51
  %v54 = vsub.f32 %v43, %v51
  %v55 = vsub.f32 %v44, %v51
  %v56 = vsub.f32 %v45, %v51
  %v57 = vld [vmem:[%s2] sm:$0x1]
  %v59 = vlaneseq
  %v60 = vshrl.u32 %v59, 7
  %v61 = vsub.s32 0, %v60
  %v62 = vrot.slane %v57, %v61
  %v64 = vmul.f32 %v53, %v62
  %v65 = vmul.f32 %v54, %v62
  %v66 = vmul.f32 %v55, %v62
  %v67 = vmul.f32 %v56, %v62
  %v68 = vrot.slane %v64, 7
  %v69 = vrot.slane %v65, 7
  %v70 = vrot.slane %v66, 7
  %v71 = vrot.slane %v67, 7
  %v72 = vlaneseq
  %v73 = vshrl.u32 %v72, 7
  %vm74 = vcmp.lt.s32.totalorder %v73, 1
  %v75 = vsel %vm74, %v70, %v71
  %v76 = vsel %vm74, %v69, %v70
  %v77 = vsel %vm74, %v68, %v69
  %v78 = vsel %vm74, %v71, %v68
  %v79 = vld [vmem:[%s3] sm:$0xff]
  %v80 = vld [vmem:[%s3 + $0x8] sm:$0xff]
  %v81 = vld [vmem:[%s3 + $0x10] sm:$0xff]
  %v82 = vld [vmem:[%s3 + $0x18] sm:$0xff]
  %v83 = vmul.f32 %v78, %v79
  %v84 = vmul.f32 %v77, %v80
  %v85 = vmul.f32 %v76, %v81
  %v86 = vmul.f32 %v75, %v82
  %v87 = vrot.slane %v64, 1
  %v88 = vrot.slane %v65, 1
  %v89 = vrot.slane %v66, 1
  %v90 = vrot.slane %v67, 1
  %vm91 = vcmp.lt.s32.totalorder %v73, 7
  %v92 = vsel %vm91, %v89, %v90
  %v93 = vsel %vm91, %v88, %v89
  %v94 = vsel %vm91, %v87, %v88
  %v95 = vsel %vm91, %v90, %v87
  %v96 = vld [vmem:[%s4] sm:$0xff]
  %v97 = vld [vmem:[%s4 + $0x8] sm:$0xff]
  %v98 = vld [vmem:[%s4 + $0x10] sm:$0xff]
  %v99 = vld [vmem:[%s4 + $0x18] sm:$0xff]
  %v100 = vmul.f32 %v94, %v96
  %v101 = vmul.f32 %v93, %v97
  %v102 = vmul.f32 %v92, %v98
  %v103 = vmul.f32 %v95, %v99
  %v104 = vpack.c.bf16 %v65, %v64
  %v105 = vpack.c.bf16 %v67, %v66
  %v106 = vld [vmem:[%s6] sm:$0xf]
  %v107 = vld [vmem:[%s6 + $0x4] sm:$0xf]
  %v108 = vld [vmem:[%s6 + $0x8] sm:$0xf]
  %v109 = vld [vmem:[%s6 + $0xc] sm:$0xf]
  %v110 = vld [vmem:[%s6 + $0x10] sm:$0xf]
  %v111 = vld [vmem:[%s6 + $0x14] sm:$0xf]
  %v112 = vld [vmem:[%s6 + $0x18] sm:$0xf]
  %v113 = vld [vmem:[%s6 + $0x1c] sm:$0xf]
  %v114 = vpack.c.bf16 %v84, %v83
  %v115 = vpack.c.bf16 %v86, %v85
  %v116 = vld [vmem:[%s5] sm:$0xf]
  %v117 = vld [vmem:[%s5 + $0x4] sm:$0xf]
  %v118 = vld [vmem:[%s5 + $0x8] sm:$0xf]
  %v119 = vld [vmem:[%s5 + $0xc] sm:$0xf]
  %v120 = vld [vmem:[%s5 + $0x10] sm:$0xf]
  %v121 = vld [vmem:[%s5 + $0x14] sm:$0xf]
  %v122 = vld [vmem:[%s5 + $0x18] sm:$0xf]
  %v123 = vld [vmem:[%s5 + $0x1c] sm:$0xf]
  %v132 = vunpack.c.l.b16 %v116
  %v133 = vunpack.c.l.b16 %v117
  %v134 = vunpack.c.l.b16 %v118
  %v135 = vunpack.c.l.b16 %v119
  %v136 = vunpack.c.l.b16 %v120
  %v137 = vunpack.c.l.b16 %v121
  %v138 = vunpack.c.l.b16 %v122
  %v139 = vunpack.c.l.b16 %v123
  %v140 = vpack.c.b16 %v133, %v132
  %v141 = vpack.c.b16 %v135, %v134
  %v142 = vpack.c.b16 %v137, %v136
  %v143 = vpack.c.b16 %v139, %v138
  %vm148 = vcmask 523264
  %v150 = vsel %vm148, %v114, 0
  %v153 = vsel %vm148, %v115, 0
  %155 = vmatprep.subr.bf16.mxu0 0
  %156 = vmatpush1.bf16.msra.mxu0 %v140
  %157 = vmatprep.subr.bf16.mxu0 0
  %158 = vmatpush1.bf16.msra.mxu0 %v141
  %159 = vmatprep.subr.bf16.mxu0 0
  %160 = vmatpush1.bf16.msra.mxu0 %v142
  %161 = vmatprep.subr.bf16.mxu0 0
  %162 = vmatpush1.bf16.msra.mxu0 %v143
  %163 = vmatprep.subr.bf16.mxu0 0
  %164 = vmatpush1.bf16.msra.mxu0 0
  %165 = vmatprep.subr.bf16.mxu0 0
  %166 = vmatpush1.bf16.msra.mxu0 0
  %167 = vmatprep.subr.bf16.mxu0 0
  %168 = vmatpush1.bf16.msra.mxu0 0
  %169 = vmatprep.subr.bf16.mxu0 0
  %170 = vmatpush1.bf16.msra.mxu0 0
  %171 = vmatprep.subr.bf16.mxu0 0
  %172 = vmatpush1.bf16.msra.mxu0 0
  %173 = vmatprep.subr.bf16.mxu0 0
  %174 = vmatpush1.bf16.msra.mxu0 0
  %175 = vmatprep.subr.bf16.mxu0 0
  %176 = vmatpush1.bf16.msra.mxu0 0
  %177 = vmatprep.subr.bf16.mxu0 0
  %178 = vmatpush1.bf16.msra.mxu0 0
  %179 = vmatprep.subr.bf16.mxu0 0
  %180 = vmatpush1.bf16.msra.mxu0 0
  %181 = vmatprep.subr.bf16.mxu0 0
  %182 = vmatpush1.bf16.msra.mxu0 0
  %183 = vmatprep.subr.bf16.mxu0 0
  %184 = vmatpush1.bf16.msra.mxu0 0
  %185 = vmatprep.subr.bf16.mxu0 0
  %186 = vmatpush1.bf16.msra.mxu0 0
  %187 = vmatprep.mubr.bf16.mxu0 0
  %188 = vmatmul.mubr.bf16.gmra.mrb[0].mxu0 %v150
  %v189 = vpop.f32.mrb[0].mxu0
  %v190 = vadd.f32 0.0, %v189
  %v191 = vpop.f32.mrb[0].mxu0
  %v192 = vpop.f32.mrb[0].mxu0
  %v193 = vadd.f32 0.0, %v192
  %v194 = vpop.f32.mrb[0].mxu0
  %195 = vmatprep.mubr.bf16.mxu0 0
  %196 = vmatmul.mubr.bf16.gmra.mrb[0].mxu0 %v153
  %v197 = vpop.f32.mrb[0].mxu0
  %v198 = vadd.f32 0.0, %v197
  %v199 = vpop.f32.mrb[0].mxu0
  %v200 = vpop.f32.mrb[0].mxu0
  %v201 = vadd.f32 0.0, %v200
  %v202 = vpop.f32.mrb[0].mxu0
  %203 = vdwg.mxu0
  %v212 = vunpack.c.l.b16 %v106
  %v213 = vunpack.c.l.b16 %v107
  %v214 = vunpack.c.l.b16 %v108
  %v215 = vunpack.c.l.b16 %v109
  %v216 = vunpack.c.l.b16 %v110
  %v217 = vunpack.c.l.b16 %v111
  %v218 = vunpack.c.l.b16 %v112
  %v219 = vunpack.c.l.b16 %v113
  %v220 = vpack.c.b16 %v213, %v212
  %v221 = vpack.c.b16 %v215, %v214
  %v222 = vpack.c.b16 %v217, %v216
  %v223 = vpack.c.b16 %v219, %v218
  %v229 = vsel %vm148, %v104, 0
  %v232 = vsel %vm148, %v105, 0
  %234 = vmatprep.subr.bf16.mxu0 0
  %235 = vmatpush1.bf16.msra.mxu0 %v220
  %236 = vmatprep.subr.bf16.mxu0 0
  %237 = vmatpush1.bf16.msra.mxu0 %v221
  %238 = vmatprep.subr.bf16.mxu0 0
  %239 = vmatpush1.bf16.msra.mxu0 %v222
  %240 = vmatprep.subr.bf16.mxu0 0
  %241 = vmatpush1.bf16.msra.mxu0 %v223
  %242 = vmatprep.subr.bf16.mxu0 0
  %243 = vmatpush1.bf16.msra.mxu0 0
  %244 = vmatprep.subr.bf16.mxu0 0
  %245 = vmatpush1.bf16.msra.mxu0 0
  %246 = vmatprep.subr.bf16.mxu0 0
  %247 = vmatpush1.bf16.msra.mxu0 0
  %248 = vmatprep.subr.bf16.mxu0 0
  %249 = vmatpush1.bf16.msra.mxu0 0
  %250 = vmatprep.subr.bf16.mxu0 0
  %251 = vmatpush1.bf16.msra.mxu0 0
  %252 = vmatprep.subr.bf16.mxu0 0
  %253 = vmatpush1.bf16.msra.mxu0 0
  %254 = vmatprep.subr.bf16.mxu0 0
  %255 = vmatpush1.bf16.msra.mxu0 0
  %256 = vmatprep.subr.bf16.mxu0 0
  %257 = vmatpush1.bf16.msra.mxu0 0
  %258 = vmatprep.subr.bf16.mxu0 0
  %259 = vmatpush1.bf16.msra.mxu0 0
  %260 = vmatprep.subr.bf16.mxu0 0
  %261 = vmatpush1.bf16.msra.mxu0 0
  %262 = vmatprep.subr.bf16.mxu0 0
  %263 = vmatpush1.bf16.msra.mxu0 0
  %264 = vmatprep.subr.bf16.mxu0 0
  %265 = vmatpush1.bf16.msra.mxu0 0
  %266 = vmatprep.mubr.bf16.mxu0 0
  %267 = vmatmul.mubr.bf16.gmra.mrb[0].mxu0 %v229
  %v268 = vpop.f32.mrb[0].mxu0
  %v269 = vadd.f32 %v190, %v268
  %v270 = vpop.f32.mrb[0].mxu0
  %v271 = vpop.f32.mrb[0].mxu0
  %v272 = vadd.f32 %v193, %v271
  %v273 = vpop.f32.mrb[0].mxu0
  %274 = vmatprep.mubr.bf16.mxu0 0
  %275 = vmatmul.mubr.bf16.gmra.mrb[0].mxu0 %v232
  %v276 = vpop.f32.mrb[0].mxu0
  %v277 = vadd.f32 %v198, %v276
  %v278 = vpop.f32.mrb[0].mxu0
  %v279 = vpop.f32.mrb[0].mxu0
  %v280 = vadd.f32 %v201, %v279
  %v281 = vpop.f32.mrb[0].mxu0
  %282 = vdwg.mxu0
  %v283 = vpack.c.bf16 %v101, %v100
  %v284 = vpack.c.bf16 %v103, %v102
  %v285 = vld [vmem:[%s7] sm:$0xf]
  %v286 = vld [vmem:[%s7 + $0x4] sm:$0xf]
  %v287 = vld [vmem:[%s7 + $0x8] sm:$0xf]
  %v288 = vld [vmem:[%s7 + $0xc] sm:$0xf]
  %v289 = vld [vmem:[%s7 + $0x10] sm:$0xf]
  %v290 = vld [vmem:[%s7 + $0x14] sm:$0xf]
  %v291 = vld [vmem:[%s7 + $0x18] sm:$0xf]
  %v292 = vld [vmem:[%s7 + $0x1c] sm:$0xf]
  %v301 = vunpack.c.l.b16 %v285
  %v302 = vunpack.c.l.b16 %v286
  %v303 = vunpack.c.l.b16 %v287
  %v304 = vunpack.c.l.b16 %v288
  %v305 = vunpack.c.l.b16 %v289
  %v306 = vunpack.c.l.b16 %v290
  %v307 = vunpack.c.l.b16 %v291
  %v308 = vunpack.c.l.b16 %v292
  %v309 = vpack.c.b16 %v302, %v301
  %v310 = vpack.c.b16 %v304, %v303
  %v311 = vpack.c.b16 %v306, %v305
  %v312 = vpack.c.b16 %v308, %v307
  %v318 = vsel %vm148, %v283, 0
  %v321 = vsel %vm148, %v284, 0
  %323 = vmatprep.subr.bf16.mxu0 0
  %324 = vmatpush1.bf16.msra.mxu0 %v309
  %325 = vmatprep.subr.bf16.mxu0 0
  %326 = vmatpush1.bf16.msra.mxu0 %v310
  %327 = vmatprep.subr.bf16.mxu0 0
  %328 = vmatpush1.bf16.msra.mxu0 %v311
  %329 = vmatprep.subr.bf16.mxu0 0
  %330 = vmatpush1.bf16.msra.mxu0 %v312
  %331 = vmatprep.subr.bf16.mxu0 0
  %332 = vmatpush1.bf16.msra.mxu0 0
  %333 = vmatprep.subr.bf16.mxu0 0
  %334 = vmatpush1.bf16.msra.mxu0 0
  %335 = vmatprep.subr.bf16.mxu0 0
  %336 = vmatpush1.bf16.msra.mxu0 0
  %337 = vmatprep.subr.bf16.mxu0 0
  %338 = vmatpush1.bf16.msra.mxu0 0
  %339 = vmatprep.subr.bf16.mxu0 0
  %340 = vmatpush1.bf16.msra.mxu0 0
  %341 = vmatprep.subr.bf16.mxu0 0
  %342 = vmatpush1.bf16.msra.mxu0 0
  %343 = vmatprep.subr.bf16.mxu0 0
  %344 = vmatpush1.bf16.msra.mxu0 0
  %345 = vmatprep.subr.bf16.mxu0 0
  %346 = vmatpush1.bf16.msra.mxu0 0
  %347 = vmatprep.subr.bf16.mxu0 0
  %348 = vmatpush1.bf16.msra.mxu0 0
  %349 = vmatprep.subr.bf16.mxu0 0
  %350 = vmatpush1.bf16.msra.mxu0 0
  %351 = vmatprep.subr.bf16.mxu0 0
  %352 = vmatpush1.bf16.msra.mxu0 0
  %353 = vmatprep.subr.bf16.mxu0 0
  %354 = vmatpush1.bf16.msra.mxu0 0
  %355 = vmatprep.mubr.bf16.mxu0 0
  %356 = vmatmul.mubr.bf16.gmra.mrb[0].mxu0 %v318
  %v357 = vpop.f32.mrb[0].mxu0
  %v358 = vadd.f32 0.0, %v357
  %v359 = vpop.f32.mrb[0].mxu0
  %v360 = vpop.f32.mrb[0].mxu0
  %v361 = vadd.f32 0.0, %v360
  %v362 = vpop.f32.mrb[0].mxu0
  %363 = vmatprep.mubr.bf16.mxu0 0
  %364 = vmatmul.mubr.bf16.gmra.mrb[0].mxu0 %v321
  %v365 = vpop.f32.mrb[0].mxu0
  %v366 = vadd.f32 0.0, %v365
  %v367 = vpop.f32.mrb[0].mxu0
  %v368 = vpop.f32.mrb[0].mxu0
  %v369 = vadd.f32 0.0, %v368
  %v370 = vpop.f32.mrb[0].mxu0
  %371 = vdwg.mxu0
  %v372 = vadd.f32 %v269, %v358
  %v373 = vadd.f32 %v272, %v361
  %v374 = vadd.f32 %v277, %v366
  %v375 = vadd.f32 %v280, %v369
  %v376 = vld [vmem:[%s8] sm:$0x1]
  %v378 = vlaneseq
  %v379 = vshrl.u32 %v378, 7
  %v380 = vsub.s32 0, %v379
  %v381 = vrot.slane %v376, %v380
  %v383 = vadd.f32 %v372, %v381
  %v384 = vadd.f32 %v373, %v381
  %v385 = vadd.f32 %v374, %v381
  %v386 = vadd.f32 %v375, %v381
  %v387 = vmax.f32 %v383, 0.0
  %v388 = vmax.f32 %v384, 0.0
  %v389 = vmax.f32 %v385, 0.0
  %v390 = vmax.f32 %v386, 0.0
  %v391 = vld [vmem:[%s9] sm:$0xf]
  %v392 = vpack.c.bf16 %v388, %v387
  %v393 = vpack.c.bf16 %v390, %v389
  %vm394 = vcmask 261120
  %v396 = vsel %vm394, %v391, 0
  %398 = vmatprep.subr.bf16.mxu0 0
  %399 = vmatpush1.bf16.msra.mxu0 %v392
  %400 = vmatprep.subr.bf16.mxu0 0
  %401 = vmatpush1.bf16.msra.mxu0 %v393
  %402 = vmatprep.subr.bf16.mxu0 0
  %403 = vmatpush1.bf16.msra.mxu0 0
  %404 = vmatprep.subr.bf16.mxu0 0
  %405 = vmatpush1.bf16.msra.mxu0 0
  %406 = vmatprep.subr.bf16.mxu0 0
  %407 = vmatpush1.bf16.msra.mxu0 0
  %408 = vmatprep.subr.bf16.mxu0 0
  %409 = vmatpush1.bf16.msra.mxu0 0
  %410 = vmatprep.subr.bf16.mxu0 0
  %411 = vmatpush1.bf16.msra.mxu0 0
  %412 = vmatprep.subr.bf16.mxu0 0
  %413 = vmatpush1.bf16.msra.mxu0 0
  %414 = vmatprep.subr.bf16.mxu0 0
  %415 = vmatpush1.bf16.msra.mxu0 0
  %416 = vmatprep.subr.bf16.mxu0 0
  %417 = vmatpush1.bf16.msra.mxu0 0
  %418 = vmatprep.subr.bf16.mxu0 0
  %419 = vmatpush1.bf16.msra.mxu0 0
  %420 = vmatprep.subr.bf16.mxu0 0
  %421 = vmatpush1.bf16.msra.mxu0 0
  %422 = vmatprep.subr.bf16.mxu0 0
  %423 = vmatpush1.bf16.msra.mxu0 0
  %424 = vmatprep.subr.bf16.mxu0 0
  %425 = vmatpush1.bf16.msra.mxu0 0
  %426 = vmatprep.subr.bf16.mxu0 0
  %427 = vmatpush1.bf16.msra.mxu0 0
  %428 = vmatprep.subr.bf16.mxu0 0
  %429 = vmatpush1.bf16.msra.mxu0 0
  %430 = vmatprep.mubr.bf16.mxu0 0
  %431 = vmatmul.mubr.bf16.gmra.mrb[0].mxu0 %v396
  %v432 = vpop.f32.mrb[0].mxu0
  %v433 = vadd.f32 0.0, %v432
  %v434 = vpop.f32.mrb[0].mxu0
  %v435 = vpop.f32.mrb[0].mxu0
  %v436 = vpop.f32.mrb[0].mxu0
  %437 = vdwg.mxu0
  %v438 = vpack.c.bf16 %v433, %v433
  %v439 = vld [vmem:[%s10] sm:$0xf]
  %v440 = vld [vmem:[%s10 + $0x4] sm:$0xf]
  %v441 = vld [vmem:[%s10 + $0x8] sm:$0xf]
  %v442 = vld [vmem:[%s10 + $0xc] sm:$0xf]
  %v443 = vld [vmem:[%s10 + $0x10] sm:$0xf]
  %v444 = vld [vmem:[%s10 + $0x14] sm:$0xf]
  %v445 = vld [vmem:[%s10 + $0x18] sm:$0xf]
  %v446 = vld [vmem:[%s10 + $0x1c] sm:$0xf]
  %v447 = vld [vmem:[%s10 + $0x20] sm:$0xf]
  %v448 = vld [vmem:[%s10 + $0x24] sm:$0xf]
  %v449 = vld [vmem:[%s10 + $0x28] sm:$0xf]
  %v450 = vld [vmem:[%s10 + $0x2c] sm:$0xf]
  %v451 = vld [vmem:[%s10 + $0x30] sm:$0xf]
  %v452 = vld [vmem:[%s10 + $0x34] sm:$0xf]
  %v453 = vld [vmem:[%s10 + $0x38] sm:$0xf]
  %v454 = vld [vmem:[%s10 + $0x3c] sm:$0xf]
  %v455 = vld [vmem:[%s11] sm:$0x1]
  %v457 = vlaneseq
  %v458 = vshrl.u32 %v457, 7
  %v459 = vsub.s32 0, %v458
  %v460 = vrot.slane %v455, %v459
  %v478 = vunpack.c.l.b16 %v439
  %v479 = vunpack.c.l.b16 %v440
  %v480 = vunpack.c.l.b16 %v441
  %v481 = vunpack.c.l.b16 %v442
  %v482 = vunpack.c.l.b16 %v443
  %v483 = vunpack.c.l.b16 %v444
  %v484 = vunpack.c.l.b16 %v445
  %v485 = vunpack.c.l.b16 %v446
  %v486 = vunpack.c.l.b16 %v447
  %v487 = vunpack.c.l.b16 %v448
  %v488 = vunpack.c.l.b16 %v449
  %v489 = vunpack.c.l.b16 %v450
  %v490 = vunpack.c.l.b16 %v451
  %v491 = vunpack.c.l.b16 %v452
  %v492 = vunpack.c.l.b16 %v453
  %v493 = vunpack.c.l.b16 %v454
  %v494 = vpack.c.b16 %v479, %v478
  %v495 = vpack.c.b16 %v481, %v480
  %v496 = vpack.c.b16 %v483, %v482
  %v497 = vpack.c.b16 %v485, %v484
  %v498 = vpack.c.b16 %v487, %v486
  %v499 = vpack.c.b16 %v489, %v488
  %v500 = vpack.c.b16 %v491, %v490
  %v501 = vpack.c.b16 %v493, %v492
  %510 = vmatprep.subr.bf16.mxu0 0
  %511 = vmatpush1.bf16.msra.mxu0 %v494
  %512 = vmatprep.subr.bf16.mxu0 0
  %513 = vmatpush1.bf16.msra.mxu0 %v495
  %514 = vmatprep.subr.bf16.mxu0 0
  %515 = vmatpush1.bf16.msra.mxu0 %v496
  %516 = vmatprep.subr.bf16.mxu0 0
  %517 = vmatpush1.bf16.msra.mxu0 %v497
  %518 = vmatprep.subr.bf16.mxu0 0
  %519 = vmatpush1.bf16.msra.mxu0 %v498
  %520 = vmatprep.subr.bf16.mxu0 0
  %521 = vmatpush1.bf16.msra.mxu0 %v499
  %522 = vmatprep.subr.bf16.mxu0 0
  %523 = vmatpush1.bf16.msra.mxu0 %v500
  %524 = vmatprep.subr.bf16.mxu0 0
  %525 = vmatpush1.bf16.msra.mxu0 %v501
  %526 = vmatprep.subr.bf16.mxu0 0
  %527 = vmatpush1.bf16.msra.mxu0 0
  %528 = vmatprep.subr.bf16.mxu0 0
  %529 = vmatpush1.bf16.msra.mxu0 0
  %530 = vmatprep.subr.bf16.mxu0 0
  %531 = vmatpush1.bf16.msra.mxu0 0
  %532 = vmatprep.subr.bf16.mxu0 0
  %533 = vmatpush1.bf16.msra.mxu0 0
  %534 = vmatprep.subr.bf16.mxu0 0
  %535 = vmatpush1.bf16.msra.mxu0 0
  %536 = vmatprep.subr.bf16.mxu0 0
  %537 = vmatpush1.bf16.msra.mxu0 0
  %538 = vmatprep.subr.bf16.mxu0 0
  %539 = vmatpush1.bf16.msra.mxu0 0
  %540 = vmatprep.subr.bf16.mxu0 0
  %541 = vmatpush1.bf16.msra.mxu0 0
  %542 = vmatprep.mubr.bf16.mxu0 0
  %543 = vmatmul.mubr.bf16.gmra.mrb[0].mxu0 %v438
  %v544 = vpop.f32.mrb[0].mxu0
  %v545 = vadd.f32 %v460, %v544
  %v546 = vpop.f32.mrb[0].mxu0
  %v547 = vpop.f32.mrb[0].mxu0
  %v548 = vpop.f32.mrb[0].mxu0
  %549 = vdwg.mxu0
  %550 = vst [vmem:[%s12] sm:$0xff] %v545
  // Predicated region
  $region50: #{forward.1} parent=0 // pred_check
    _
  $region51: #{forward.1} parent=0 // pred_check_branch
    %552 = sbr.rel (0) target = $region53
  $region52: #{forward.1} parent=0 // pred_region
    _
  $region53: #{forward.1} parent=0 // pred_fallthru
    _
  // Predicated region
  $region54: #{forward.1} parent=0 // pred_check
    _
  $region55: #{forward.1} parent=0 // pred_check_branch
    %554 = sbr.rel (0) target = $region57
  $region56: #{forward.1} parent=0 // pred_region
    _
  $region57: #{forward.1} parent=0 // pred_fallthru
    _

</llo_original>
